<compile_context>
chip_gen: v5e
topology: v5e:2x2
jax: 0.10.0
libtpu: 0.0.40
codegen_flags: <defaults>
</compile_context>

<pallas_src>
import jax
import jax.numpy as jnp
from jax.experimental import pallas as pl
from jax.experimental.pallas import tpu as pltpu

ALPHA = 20.0
MARGIN_REAL = 0.9
MARGIN_FAKE = 0.2

_LANES = 128
_SUBLANES = 8
_ROW_ALIGN = 32          # safe sublane multiple for f32 / bf16 / int8 tiles
_SENTINEL = -1e30        # large finite negative -> softplus contributes exactly 0


def _cdiv(a: int, b: int) -> int:
    return -(-a // b)


def _round_up(a: int, b: int) -> int:
    return _cdiv(a, b) * b


def _make_kernel(tile_rows, alpha, margin_real, margin_fake):
    alpha_mr = float(alpha) * float(margin_real)
    alpha_mf = float(alpha) * float(margin_fake)
    alpha = float(alpha)
    sub_tiles = tile_rows // _SUBLANES

    def kernel(scores_ref, labels_ref, out_ref, acc_ref):
        i = pl.program_id(1)   # tile index within the split ("arbitrary")

        @pl.when(i == 0)
        def _init():
            acc_ref[...] = jnp.zeros_like(acc_ref)

        # cast-after-load keeps the HBM stream in its native (possibly bf16) width
        s = scores_ref[...].astype(jnp.float32)    # (TR, 128) f32
        lab = labels_ref[...]                      # (TR, 128) int

        # alpha folded into the margins; labels other than 0/1 pass through,
        # matching the in-place PyTorch indexing semantics.
        t = alpha * s
        x = jnp.where(lab == 0, alpha_mr - t,
                      jnp.where(lab == 1, t - alpha_mf, t))

        # numerically stable softplus: log(1+exp(x)) = max(x,0) + log1p(exp(-|x|))
        sp = jnp.maximum(x, 0.0) + jnp.log1p(jnp.exp(-jnp.abs(x)))

        # collapse (TR,128) -> (8,128) with pure VPU vreg adds (no XLU, no
        # full-tile accumulator traffic), then accumulate into the tiny carry.
        acc_ref[...] += sp.reshape(sub_tiles, _SUBLANES, _LANES).sum(axis=0)

        @pl.when(i == pl.num_programs(1) - 1)
        def _finalize():
            out_ref[...] = acc_ref[...]

    return kernel


def ocsoftmax_loss(scores, labels, *, alpha=ALPHA, margin_real=MARGIN_REAL,
                   margin_fake=MARGIN_FAKE, tile_rows=2048, num_splits=None):
    """scores: (N,) float, labels: (N,) int/bool.  Returns scalar f32 loss."""
    n = scores.shape[0]
    rows = _cdiv(n, _LANES)

    # keep dtypes native where possible (avoid extra HBM conversion passes)
    s = scores.reshape(-1)
    if not jnp.issubdtype(s.dtype, jnp.floating):
        s = s.astype(jnp.float32)
    lab = labels.reshape(-1)
    if not jnp.issubdtype(lab.dtype, jnp.integer):
        lab = lab.astype(jnp.int32)

    tile_rows = max(_ROW_ALIGN, _round_up(int(tile_rows), _ROW_ALIGN))
    if num_splits is None:
        # use both TensorCores (v7x) only when each core gets >=2 full tiles;
        # on v5e/v6e the extra "parallel" axis simply iterates serially.
        num_splits = 2 if rows >= 4 * tile_rows else 1
    rows_per_split = _cdiv(rows, num_splits)
    tr = max(_ROW_ALIGN, min(tile_rows, _round_up(rows_per_split, _ROW_ALIGN)))
    tiles_per_split = max(1, _cdiv(rows, num_splits * tr))
    padded_rows = num_splits * tiles_per_split * tr
    padded_n = padded_rows * _LANES

    if padded_n != n:
        # sentinel padding: softplus(alpha*(sentinel - margin_fake)) == 0, so no
        # in-kernel mask is needed and the divisor stays the true N.
        pad = padded_n - n
        s = jnp.pad(s, (0, pad), constant_values=_SENTINEL)
        lab = jnp.pad(lab, (0, pad), constant_values=1)
    s2 = s.reshape(padded_rows, _LANES)
    l2 = lab.reshape(padded_rows, _LANES)

    kernel = _make_kernel(tr, alpha, margin_real, margin_fake)

    # scoped-VMEM budget: double-buffered inputs + slack (v5e default is 16 MiB)
    per_step_bytes = tr * _LANES * (s2.dtype.itemsize + l2.dtype.itemsize)
    vmem_limit = min(64 << 20, max(32 << 20, 3 * per_step_bytes))

    in_map = lambda c, i: (c * tiles_per_split + i, 0)
    partials = pl.pallas_call(
        kernel,
        out_shape=jax.ShapeDtypeStruct((num_splits * _SUBLANES, _LANES), jnp.float32),
        grid=(num_splits, tiles_per_split),
        in_specs=[
            pl.BlockSpec((tr, _LANES), in_map),   # scores tile (native float dtype)
            pl.BlockSpec((tr, _LANES), in_map),   # labels tile (native int dtype)
        ],
        out_specs=pl.BlockSpec((_SUBLANES, _LANES), lambda c, i: (c, 0)),
        scratch_shapes=[pltpu.VMEM((_SUBLANES, _LANES), jnp.float32)],
        compiler_params=pltpu.CompilerParams(
            dimension_semantics=("parallel", "arbitrary"),
            vmem_limit_bytes=int(vmem_limit)),
    )(s2, l2)

    # tiny final reduction + mean in JAX (padded elements contribute exactly 0)
    return jnp.sum(partials) / jnp.float32(n)


def _reference(scores, labels, alpha=ALPHA, margin_real=MARGIN_REAL,
               margin_fake=MARGIN_FAKE):
    s = scores.astype(jnp.float32)
    adj = jnp.where(labels == 0, margin_real - s,
                    jnp.where(labels == 1, s - margin_fake, s))
    x = alpha * adj
    return jnp.mean(jnp.maximum(x, 0.0) + jnp.log1p(jnp.exp(-jnp.abs(x))))


if __name__ == "__main__":
    key = jax.random.PRNGKey(0)
    k1, k2, k3, k4 = jax.random.split(key, 4)

    # Case 1: small N that is NOT a multiple of 128 -> exercises sentinel padding.
    n1 = 300
    scores1 = jax.random.normal(k1, (n1,), dtype=jnp.float32)
    labels1 = jax.random.bernoulli(k2, 0.5, (n1,)).astype(jnp.int32)
    loss1 = ocsoftmax_loss(scores1, labels1)
    jax.block_until_ready(loss1)
    ref1 = _reference(scores1, labels1)
    assert jnp.allclose(loss1, ref1, rtol=1e-5, atol=1e-5), (loss1, ref1)

    # Case 2: multi-tile + two-split path (same code path as large N, shrunk
    # tiles so the test stays small).
    n2 = 32768
    scores2 = jax.random.normal(k3, (n2,), dtype=jnp.float32)
    labels2 = jax.random.bernoulli(k4, 0.5, (n2,)).astype(jnp.int32)
    loss2 = ocsoftmax_loss(scores2, labels2, tile_rows=32, num_splits=2)
    jax.block_until_ready(loss2)
    ref2 = _reference(scores2, labels2)
    assert jnp.allclose(loss2, ref2, rtol=1e-5, atol=1e-5), (loss2, ref2)

    print("KERNEL_OK")
</pallas_src>

<mosaic_0001>
module attributes {stable_mosaic.version = 11 : i64} {
  func.func @kernel(%arg0: i32, %arg1: i32, %arg2: memref<32x128xf32, #tpu.memory_space<vmem>>, %arg3: memref<32x128xi32, #tpu.memory_space<vmem>>, %arg4: memref<8x128xf32, #tpu.memory_space<vmem>>, %arg5: memref<8x128xf32, #tpu.memory_space<vmem>>) attributes {dimension_semantics = [#tpu.dimension_semantics<parallel>, #tpu.dimension_semantics<arbitrary>], iteration_bounds = array<i64: 1, 1>, scalar_prefetch = 0 : i64, scratch_operands = 1 : i64, tpu.core_type = #tpu.core_type<tc>, window_params = [{transform_indices = @transform_0, window_bounds = array<i64: 32, 128>}, {transform_indices = @transform_1, window_bounds = array<i64: 32, 128>}, {transform_indices = @transform_2, window_bounds = array<i64: 8, 128>}]} {
    %c0_i32 = arith.constant 0 : i32
    %0 = arith.cmpi eq, %arg1, %c0_i32 : i32
    %1 = arith.extui %0 : i1 to i32
    %c0_i32_0 = arith.constant 0 : i32
    %2 = arith.cmpi ne, %1, %c0_i32_0 : i32
    scf.if %2 {
      %cst_16 = arith.constant 0.000000e+00 : f32
      %33 = vector.broadcast %cst_16 : f32 to vector<8x128xf32>
      %c0_17 = arith.constant 0 : index
      %c0_18 = arith.constant 0 : index
      %34 = vector.load %arg5[%c0_17, %c0_18] : memref<8x128xf32, #tpu.memory_space<vmem>>, vector<8x128xf32>
      tpu.vector_store %arg5[%c0_17, %c0_18], %33 {strides = array<i32>} : memref<8x128xf32, #tpu.memory_space<vmem>>, vector<8x128xf32>,
    } else {
    }
    %c0 = arith.constant 0 : index
    %c0_1 = arith.constant 0 : index
    %3 = vector.load %arg2[%c0, %c0_1] : memref<32x128xf32, #tpu.memory_space<vmem>>, vector<32x128xf32>
    %c0_2 = arith.constant 0 : index
    %c0_3 = arith.constant 0 : index
    %4 = vector.load %arg3[%c0_2, %c0_3] : memref<32x128xi32, #tpu.memory_space<vmem>>, vector<32x128xi32>
    %cst = arith.constant 2.000000e+01 : f32
    %5 = vector.broadcast %cst : f32 to vector<32x128xf32>
    %6 = arith.mulf %5, %3 : vector<32x128xf32>
    %c0_i32_4 = arith.constant 0 : i32
    %7 = vector.broadcast %c0_i32_4 : i32 to vector<32x128xi32>
    %8 = arith.cmpi eq, %4, %7 : vector<32x128xi32>
    %cst_5 = arith.constant 1.800000e+01 : f32
    %9 = vector.broadcast %cst_5 : f32 to vector<32x128xf32>
    %10 = arith.subf %9, %6 : vector<32x128xf32>
    %c1_i32 = arith.constant 1 : i32
    %11 = vector.broadcast %c1_i32 : i32 to vector<32x128xi32>
    %12 = arith.cmpi eq, %4, %11 : vector<32x128xi32>
    %cst_6 = arith.constant 4.000000e+00 : f32
    %13 = vector.broadcast %cst_6 : f32 to vector<32x128xf32>
    %14 = arith.subf %6, %13 : vector<32x128xf32>
    %15 = arith.select %12, %14, %6 : vector<32x128xi1>, vector<32x128xf32>
    %16 = arith.select %8, %10, %15 : vector<32x128xi1>, vector<32x128xf32>
    %cst_7 = arith.constant 0.000000e+00 : f32
    %17 = vector.broadcast %cst_7 : f32 to vector<32x128xf32>
    %18 = arith.maximumf %16, %17 : vector<32x128xf32>
    %19 = math.absf %16 : vector<32x128xf32>
    %cst_8 = arith.constant 0.000000e+00 : f32
    %20 = vector.broadcast %cst_8 : f32 to vector<32x128xf32>
    %21 = arith.subf %20, %19 : vector<32x128xf32>
    %22 = math.exp %21 : vector<32x128xf32>
    %23 = math.log1p %22 : vector<32x128xf32>
    %24 = arith.addf %18, %23 : vector<32x128xf32>
    %c0_9 = arith.constant 0 : index
    %c0_10 = arith.constant 0 : index
    %25 = vector.load %arg5[%c0_9, %c0_10] : memref<8x128xf32, #tpu.memory_space<vmem>>, vector<8x128xf32>
    %26 = vector.shape_cast %24 : vector<32x128xf32> to vector<4x8x128xf32>
    %cst_11 = arith.constant dense<0.000000e+00> : vector<8x128xf32>
    %27 = vector.multi_reduction <add>, %26, %cst_11 [0] : vector<4x8x128xf32> to vector<8x128xf32>
    %28 = arith.addf %25, %27 : vector<8x128xf32>
    %c0_12 = arith.constant 0 : index
    %c0_13 = arith.constant 0 : index
    %29 = vector.load %arg5[%c0_12, %c0_13] : memref<8x128xf32, #tpu.memory_space<vmem>>, vector<8x128xf32>
    tpu.vector_store %arg5[%c0_12, %c0_13], %28 {strides = array<i32>} : memref<8x128xf32, #tpu.memory_space<vmem>>, vector<8x128xf32>,
    %c0_i32_14 = arith.constant 0 : i32
    %30 = arith.cmpi eq, %arg1, %c0_i32_14 : i32
    %31 = arith.extui %30 : i1 to i32
    %c0_i32_15 = arith.constant 0 : i32
    %32 = arith.cmpi ne, %31, %c0_i32_15 : i32
    scf.if %32 {
      %c0_16 = arith.constant 0 : index
      %c0_17 = arith.constant 0 : index
      %33 = vector.load %arg5[%c0_16, %c0_17] : memref<8x128xf32, #tpu.memory_space<vmem>>, vector<8x128xf32>
      %c0_18 = arith.constant 0 : index
      %c0_19 = arith.constant 0 : index
      %34 = vector.load %arg4[%c0_18, %c0_19] : memref<8x128xf32, #tpu.memory_space<vmem>>, vector<8x128xf32>
      tpu.vector_store %arg4[%c0_18, %c0_19], %33 {strides = array<i32>} : memref<8x128xf32, #tpu.memory_space<vmem>>, vector<8x128xf32>,
    } else {
    }
    return
  }
  func.func @transform_0(%arg0: i32, %arg1: i32) -> (i32, i32) {
    %c1_i32 = arith.constant 1 : i32
    %0 = arith.muli %arg0, %c1_i32 : i32
    %1 = arith.addi %0, %arg1 : i32
    %c0_i32 = arith.constant 0 : i32
    %c0_i32_0 = arith.constant 0 : i32
    return %1, %c0_i32 : i32, i32
  }
  func.func @transform_1(%arg0: i32, %arg1: i32) -> (i32, i32) {
    %c1_i32 = arith.constant 1 : i32
    %0 = arith.muli %arg0, %c1_i32 : i32
    %1 = arith.addi %0, %arg1 : i32
    %c0_i32 = arith.constant 0 : i32
    %c0_i32_0 = arith.constant 0 : i32
    return %1, %c0_i32 : i32, i32
  }
  func.func @transform_2(%arg0: i32, %arg1: i32) -> (i32, i32) {
    %c0_i32 = arith.constant 0 : i32
    %c0_i32_0 = arith.constant 0 : i32
    return %arg0, %c0_i32 : i32, i32
  }
}

</mosaic_0001>

<llo_original>
// kernel: tpu_custom_call.1
$region0: #{tpu_custom_call.1}
  #allocation0 [shape = 'u32[]', space=smem, size = 0x4, offset = 0x4, fixed_abs, tag = 'smem constant byte address 0x4 - core index']
  #allocation1 [shape = 'u32[72,128]{1,0:T(1,128)}', space=vmem, size = 0x9000, scoped, tag = 'internal scratch']
  #allocation2 [shape = 'f32[8,128]{1,0:T(8,128)}', space=vmem, size = 0x1000, scoped, tag = 'scratch operand']
  %s0 = inlined_call_operand.hbm [shape: f32[32,128], index: 0, kind: input, shape index: {}]
  %s1 = inlined_call_operand.hbm [shape: s32[32,128], index: 1, kind: input, shape index: {}]
  %s2 = inlined_call_operand.hbm [shape: f32[8,128], index: 2, kind: output, shape index: {}]
  %s3 = sld [smem:[#allocation0]]
  $region34: #{tpu_custom_call.1} parent=0
    _
  %s5 = ssub.s32 1, %s3
  %s6 = scalar_select 0, %s5, %s3
  $region1: #{tpu_custom_call.1} parent=0
    #allocation3 [shape = 'u8[16384]{0}', space=vmem, size = 0x4000, scoped, tag = 'input window, operand 0, single buffered']
    #allocation4 [shape = 's32[1]{0}', space=sflag, size = 0x4, scoped, tag = 'scoped memory for tpu_custom_call.1']
    #allocation5 [shape = 's32[1]{0}', space=sflag, size = 0x4, scoped, tag = 'scoped memory for tpu_custom_call.1']
    #allocation6 [shape = 'u8[16384]{0}', space=vmem, size = 0x4000, scoped, tag = 'input window, operand 1, single buffered']
    #allocation7 [shape = 's32[1]{0}', space=sflag, size = 0x4, scoped, tag = 'scoped memory for tpu_custom_call.1']
    #allocation8 [shape = 'u8[4096]{0}', space=vmem, size = 0x1000, scoped, tag = 'output window, operand 0, single buffered']
    %7 = vsyncpa [#allocation4], 0
    %8 = vsyncpa [#allocation7], 0
    %9 = vsyncpa [#allocation5], 0
    // Predicated region
    $region2: #{tpu_custom_call.1} parent=1 // pred_check
      _
    $region3: #{tpu_custom_call.1} parent=1 // pred_check_branch
      %11 = sbr.rel (0) target = $region5
    $region4: #{tpu_custom_call.1} parent=1 // pred_region
      %s12 = sadd.s32 0, 0
      %s13 = smul.u32 4, %s12
      %15 = vsyncadd [#allocation4], 0
      %s16 = smul.addr %s13, 8
      %s17 = scalar_lea.hbm %s0, %s16
      %s18 = sshll.u32 %s17, 4
      %s19 = int_to_ptr.hbm [resolvable:$true] %s18
      %s20 = sshll.u32 [#allocation3], 4
      %s21 = int_to_ptr.vmem [resolvable:$true] %s20
      %26 = dma.hbm_to_vmem [thread:$0]  %s19, 512, %s21, [#allocation4], 128, 128, 8
    $region5: #{tpu_custom_call.1} parent=1 // pred_fallthru
      _
    // Predicated region
    $region6: #{tpu_custom_call.1} parent=1 // pred_check
      _
    $region7: #{tpu_custom_call.1} parent=1 // pred_check_branch
      %28 = sbr.rel (0) target = $region9
    $region8: #{tpu_custom_call.1} parent=1 // pred_region
      %s29 = sadd.s32 0, 0
      %s30 = smul.u32 4, %s29
      %32 = vsyncadd [#allocation7], 0
      %s33 = smul.addr %s30, 8
      %s34 = scalar_lea.hbm %s1, %s33
      %s35 = sshll.u32 %s34, 4
      %s36 = int_to_ptr.hbm [resolvable:$true] %s35
      %s37 = sshll.u32 [#allocation6], 4
      %s38 = int_to_ptr.vmem [resolvable:$true] %s37
      %43 = dma.hbm_to_vmem [thread:$0]  %s36, 512, %s38, [#allocation7], 128, 128, 8
    $region9: #{tpu_custom_call.1} parent=1 // pred_fallthru
      _
    // Predicated region
    $region10: #{tpu_custom_call.1} parent=1 // pred_check
      _
    $region11: #{tpu_custom_call.1} parent=1 // pred_check_branch
      %45 = sbr.rel (0) target = $region13
    $region12: #{tpu_custom_call.1} parent=1 // pred_region
      %47 = dma.done [#allocation4], 512
    $region13: #{tpu_custom_call.1} parent=1 // pred_fallthru
      _
    // Predicated region
    $region14: #{tpu_custom_call.1} parent=1 // pred_check
      _
    $region15: #{tpu_custom_call.1} parent=1 // pred_check_branch
      %49 = sbr.rel (0) target = $region17
    $region16: #{tpu_custom_call.1} parent=1 // pred_region
      %51 = dma.done [#allocation7], 512
    $region17: #{tpu_custom_call.1} parent=1 // pred_fallthru
      _
    %s52 = sadd.s32 0, 0
    %s53 = smul.u32 4, %s52
    %s54 = sadd.s32 0, 0
    %s55 = smul.u32 4, %s54
    %p56 = scmp.eq.s32.totalorder 0, 0
    // Predicated region
    $region18: #{tpu_custom_call.1} parent=1 // pred_check
      %p57 = pneg %p56
    $region19: #{tpu_custom_call.1} parent=1 // pred_check_branch
      %59 = sbr.rel (%p57) target = $region21
    $region20: #{tpu_custom_call.1} parent=1 // pred_region
      %60 = vst [vmem:[#allocation2] sm:$0xff] 0.0
    $region21: #{tpu_custom_call.1} parent=1 // pred_fallthru
      _
    %v61 = vld [vmem:[#allocation3] sm:$0xff]
    %v62 = vld [vmem:[#allocation3 + $0x8] sm:$0xff]
    %v63 = vld [vmem:[#allocation3 + $0x10] sm:$0xff]
    %v64 = vld [vmem:[#allocation3 + $0x18] sm:$0xff]
    %v65 = vld [vmem:[#allocation6] sm:$0xff]
    %v66 = vld [vmem:[#allocation6 + $0x8] sm:$0xff]
    %v67 = vld [vmem:[#allocation6 + $0x10] sm:$0xff]
    %v68 = vld [vmem:[#allocation6 + $0x18] sm:$0xff]
    %v69 = vmul.f32 %v61, 20.0
    %v70 = vmul.f32 %v62, 20.0
    %v71 = vmul.f32 %v63, 20.0
    %v72 = vmul.f32 %v64, 20.0
    %vm73 = vcmp.eq.s32.totalorder %v65, 0
    %vm74 = vcmp.eq.s32.totalorder %v66, 0
    %vm75 = vcmp.eq.s32.totalorder %v67, 0
    %vm76 = vcmp.eq.s32.totalorder %v68, 0
    %v77 = vsub.f32 18.0, %v69
    %v78 = vsub.f32 18.0, %v70
    %v79 = vsub.f32 18.0, %v71
    %v80 = vsub.f32 18.0, %v72
    %vm81 = vcmp.eq.s32.totalorder %v65, 1
    %vm82 = vcmp.eq.s32.totalorder %v66, 1
    %vm83 = vcmp.eq.s32.totalorder %v67, 1
    %vm84 = vcmp.eq.s32.totalorder %v68, 1
    %v85 = vsub.f32 %v69, 4.0
    %v86 = vsub.f32 %v70, 4.0
    %v87 = vsub.f32 %v71, 4.0
    %v88 = vsub.f32 %v72, 4.0
    %v89 = vsel %vm81, %v85, %v69
    %v90 = vsel %vm82, %v86, %v70
    %v91 = vsel %vm83, %v87, %v71
    %v92 = vsel %vm84, %v88, %v72
    %v93 = vsel %vm73, %v77, %v89
    %v94 = vsel %vm74, %v78, %v90
    %v95 = vsel %vm75, %v79, %v91
    %v96 = vsel %vm76, %v80, %v92
    %v97 = vmax.f32 %v93, 0.0
    %v98 = vmax.f32 %v94, 0.0
    %v99 = vmax.f32 %v95, 0.0
    %v100 = vmax.f32 %v96, 0.0
    %v101 = vand.u32 2147483647, %v93
    %v102 = vand.u32 2147483647, %v94
    %v103 = vand.u32 2147483647, %v95
    %v104 = vand.u32 2147483647, %v96
    %v105 = vsub.f32 0.0, %v101
    %v106 = vsub.f32 0.0, %v102
    %v107 = vsub.f32 0.0, %v103
    %v108 = vsub.f32 0.0, %v104
    %v109 = vmul.f32 %v105, 1.442695
    %v110 = vpow.pop %v109
    %v111 = vmul.f32 %v106, 1.442695
    %v112 = vpow.pop %v111
    %v113 = vmul.f32 %v107, 1.442695
    %v114 = vpow.pop %v113
    %v115 = vmul.f32 %v108, 1.442695
    %v116 = vpow.pop %v115
    %v117 = vadd.f32 %v110, 1.0
    %v118 = vlog2.pop %v117
    %v119 = vmul.f32 %v118, 0.6931472
    %v120 = vmul.f32 -0.5, %v110
    %v121 = vadd.f32 %v120, 1.0
    %v122 = vmul.f32 %v121, %v110
    %v123 = vand.u32 2147483647, %v110
    %vm124 = vcmp.lt.f32.partialorder %v123, 0.0004427343
    %v125 = vsel %vm124, %v122, %v119
    %v126 = vadd.f32 %v112, 1.0
    %v127 = vlog2.pop %v126
    %v128 = vmul.f32 %v127, 0.6931472
    %v129 = vmul.f32 -0.5, %v112
    %v130 = vadd.f32 %v129, 1.0
    %v131 = vmul.f32 %v130, %v112
    %v132 = vand.u32 2147483647, %v112
    %vm133 = vcmp.lt.f32.partialorder %v132, 0.0004427343
    %v134 = vsel %vm133, %v131, %v128
    %v135 = vadd.f32 %v114, 1.0
    %v136 = vlog2.pop %v135
    %v137 = vmul.f32 %v136, 0.6931472
    %v138 = vmul.f32 -0.5, %v114
    %v139 = vadd.f32 %v138, 1.0
    %v140 = vmul.f32 %v139, %v114
    %v141 = vand.u32 2147483647, %v114
    %vm142 = vcmp.lt.f32.partialorder %v141, 0.0004427343
    %v143 = vsel %vm142, %v140, %v137
    %v144 = vadd.f32 %v116, 1.0
    %v145 = vlog2.pop %v144
    %v146 = vmul.f32 %v145, 0.6931472
    %v147 = vmul.f32 -0.5, %v116
    %v148 = vadd.f32 %v147, 1.0
    %v149 = vmul.f32 %v148, %v116
    %v150 = vand.u32 2147483647, %v116
    %vm151 = vcmp.lt.f32.partialorder %v150, 0.0004427343
    %v152 = vsel %vm151, %v149, %v146
    %v153 = vadd.f32 %v97, %v125
    %v154 = vadd.f32 %v98, %v134
    %v155 = vadd.f32 %v99, %v143
    %v156 = vadd.f32 %v100, %v152
    %v157 = vld [vmem:[#allocation2] sm:$0xff]
    %v158 = vadd.f32 %v153, %v154
    %v159 = vadd.f32 %v158, %v155
    %v160 = vadd.f32 %v159, %v156
    %v161 = vadd.f32 %v157, %v160
    %162 = vst [vmem:[#allocation2] sm:$0xff] %v161
    // Predicated region
    $region22: #{tpu_custom_call.1} parent=1 // pred_check
      %p163 = pneg %p56
    $region23: #{tpu_custom_call.1} parent=1 // pred_check_branch
      %165 = sbr.rel (%p163) target = $region25
    $region24: #{tpu_custom_call.1} parent=1 // pred_region
      %v166 = vld [vmem:[#allocation2] sm:$0xff]
      %167 = vst [vmem:[#allocation8] sm:$0xff] %v166
    $region25: #{tpu_custom_call.1} parent=1 // pred_fallthru
      _
    // Predicated region
    $region26: #{tpu_custom_call.1} parent=1 // pred_check
      _
    $region27: #{tpu_custom_call.1} parent=1 // pred_check_branch
      %169 = sbr.rel (0) target = $region29
    $region28: #{tpu_custom_call.1} parent=1 // pred_region
      %171 = vsyncadd [#allocation5], 0
      %s173 = sshll.u32 [#allocation8], 4
      %s174 = int_to_ptr.vmem [resolvable:$true] %s173
      %s175 = sshll.u32 %s2, 4
      %s176 = int_to_ptr.hbm [resolvable:$true] %s175
      %178 = dma.vmem_to_hbm [thread:$0]  %s174, 128, %s176, [#allocation5]
    $region29: #{tpu_custom_call.1} parent=1 // pred_fallthru
      _
    // Predicated region
    $region30: #{tpu_custom_call.1} parent=1 // pred_check
      _
    $region31: #{tpu_custom_call.1} parent=1 // pred_check_branch
      %180 = sbr.rel (0) target = $region33
    $region32: #{tpu_custom_call.1} parent=1 // pred_region
      %182 = dma.done [#allocation5], 128
    $region33: #{tpu_custom_call.1} parent=1 // pred_fallthru
      _
    %183 = vsyncpa [#allocation4], 1
    %184 = vsyncpa [#allocation7], 1
    %185 = vsyncpa [#allocation5], 1

</llo_original>
